<compile_context>
chip_gen: v7x
topology: tpu7x:2x2x1
jax: 0.10.0
libtpu: 0.0.40
codegen_flags: <defaults>
</compile_context>

<pallas_src>
import functools
import math

import numpy as np
import jax
import jax.numpy as jnp
from jax.experimental import pallas as pl
from jax.experimental.pallas import tpu as pltpu

N_QUBITS = 3
N_FUZZY_MEM = 2
DEFUZZ_LAYER = 2
N_OUT = 2 ** N_QUBITS  # 8


# ----------------------------- host-side glue: build the 8x8 circuit-2 unitary ----------
def build_defuzz_unitary(defuzz_weights: np.ndarray) -> np.ndarray:
    """defuzz_weights: (DEFUZZ_LAYER, 3*N_QUBITS) float64 -> (8, 8) complex128 unitary."""
    dim = 2 ** N_QUBITS
    I2 = np.eye(2, dtype=np.complex128)

    def embed(gate, q):
        mats = [I2, I2, I2]
        mats[q] = gate
        # qiskit little-endian: basis index k = q2*4 + q1*2 + q0  ->  kron(m2, m1, m0)
        return np.kron(mats[2], np.kron(mats[1], mats[0]))

    def rx(t):
        c, s = np.cos(t / 2.0), np.sin(t / 2.0)
        return np.array([[c, -1j * s], [-1j * s, c]], dtype=np.complex128)

    def rz(t):
        return np.array([[np.exp(-1j * t / 2.0), 0.0],
                         [0.0, np.exp(1j * t / 2.0)]], dtype=np.complex128)

    def cx(c, t):
        M = np.zeros((dim, dim), dtype=np.complex128)
        for k in range(dim):
            k2 = k ^ (1 << t) if (k >> c) & 1 else k
            M[k2, k] = 1.0
        return M

    U = np.eye(dim, dtype=np.complex128)
    for layer in range(DEFUZZ_LAYER):
        for j in range(N_QUBITS - 1):
            U = cx(j, j + 1) @ U
        U = cx(N_QUBITS - 1, 0) @ U
        for j in range(N_QUBITS):
            U = embed(rx(defuzz_weights[layer, 3 * j]), j) @ U
            U = embed(rz(defuzz_weights[layer, 3 * j + 1]), j) @ U
            U = embed(rx(defuzz_weights[layer, 3 * j + 2]), j) @ U
    return U


def build_zsign() -> np.ndarray:
    """Zsign[k, j] = +1 if bit j of basis index k is 0 else -1  -> <Z_j> = probs @ Zsign."""
    zs = np.zeros((2 ** N_QUBITS, N_QUBITS), dtype=np.float32)
    for k in range(2 ** N_QUBITS):
        for j in range(N_QUBITS):
            zs[k, j] = 1.0 - 2.0 * ((k >> j) & 1)
    return zs


# ----------------------------- Pallas kernels (feature-major) ---------------------------
def _stage1_kernel(xT_ref, w1_ref, b1_ref, m0_ref, m1_ref, g0_ref, g1_ref, qT_ref):
    """x tile (10, BT) -> fuzzy / circuit-1 outputs q tile (8, BT)."""
    f32 = jnp.float32
    xT = xT_ref[...]                                                   # (10, BT)

    # nn.Linear(10, 3), feature-major: h = W1 @ x^T + b1
    h = jnp.dot(w1_ref[...], xT, preferred_element_type=f32) + b1_ref[...]   # (3, BT)

    # GroupNorm(1, 3): per-sample (per-column) normalization, weight=1 bias=0
    mu = jnp.mean(h, axis=0, keepdims=True)
    var = jnp.mean((h - mu) ** 2, axis=0, keepdims=True)
    hn = (h - mu) * jax.lax.rsqrt(var + 1e-5)

    # Gaussian fuzzy memberships; g = 1/(2*theta^2) precomputed on host
    f0 = jnp.exp(-((hn - m0_ref[...]) ** 2) * g0_ref[...])             # (3, BT)
    f1 = jnp.exp(-((hn - m1_ref[...]) ** 2) * g1_ref[...])

    # analytic P(qubit_j = 1) after RY encoding:
    # sin^2(arcsin(clamp(sqrt(f+1e-16), -.99999, .99999))) == min(f+1e-16, 0.99999^2)
    cap = 0.99999 ** 2
    p0 = jnp.minimum(f0 + 1e-16, cap)
    p1 = jnp.minimum(f1 + 1e-16, cap)

    # quantum_circuit1 readout [:, 1] = P(q0=1, q1=0, q2=0).
    # Outcome i selects membership bit (2 - j) of i for feature j (MSB-first like the
    # original `bin(i)` loop).  Vectorized over all 8 outcomes: (8, BT), pure VPU selects.
    a0, b0 = p0[0:1, :], p1[0:1, :]
    a1, b1 = 1.0 - p0[1:2, :], 1.0 - p1[1:2, :]
    a2, b2 = 1.0 - p0[2:3, :], 1.0 - p1[2:3, :]
    bt = qT_ref.shape[1]
    row = jax.lax.broadcasted_iota(jnp.int32, (N_OUT, bt), 0)          # outcome index
    t0 = jnp.where(((row >> 2) & 1) == 1, b0, a0)
    t1 = jnp.where(((row >> 1) & 1) == 1, b1, a1)
    t2 = jnp.where((row & 1) == 1, b2, a2)
    qT_ref[...] = (t0 * t1 * t2).astype(qT_ref.dtype)


def _stage2_kernel(qT_ref, bnm_ref, bns_ref, ur_ref, zw2_ref, b2_ref, oT_ref):
    """q tile (8, BT) -> BN -> amplitude encode -> circuit-2 -> linear -> out tile (10, BT)."""
    f32 = jnp.float32
    q = qT_ref[...]                                                    # (8, BT)

    # BatchNorm1d(8), training mode: full-batch stats computed in the wrapper (weight=1 bias=0)
    y = (q - bnm_ref[...]) * bns_ref[...]

    # amplitude encoding: per-sample L2 normalization (guard zero norm like the original)
    ss = jnp.sum(y * y, axis=0, keepdims=True)                         # (1, BT)
    s = y * jnp.where(ss > 0.0, jax.lax.rsqrt(ss), 1.0)

    # fixed circuit-2 unitary: one matmul with [Re(U); Im(U)] stacked -> (16, BT)
    psi = jnp.dot(ur_ref[...], s, preferred_element_type=f32)
    psi2 = psi * psi
    probs = psi2[0:N_OUT, :] + psi2[N_OUT:2 * N_OUT, :]                # |psi|^2, (8, BT)

    # <Z_j> expectations folded with softmax_linear: zw2 = W2 @ Zsign^T  (10, 8)
    oT_ref[...] = (jnp.dot(zw2_ref[...], probs, preferred_element_type=f32)
                   + b2_ref[...]).astype(oT_ref.dtype)


# ----------------------------- wrapper -----------------------------------------------
def _round_up(a, b):
    return ((a + b - 1) // b) * b


@functools.partial(jax.jit, static_argnames=("block_b",))
def qfnn_forward(x, params, block_b=1024):
    B = x.shape[0]
    # Lane-axis batch tile: always a multiple of 128 (unmasked stores), capped at block_b.
    BT = min(block_b, _round_up(B, 128))
    Bp = _round_up(B, BT)
    nb = Bp // BT

    xT = jnp.pad(x.astype(jnp.float32).T, ((0, 0), (0, Bp - B)))       # (10, Bp)

    parallel = pltpu.CompilerParams(dimension_semantics=("parallel",))
    const = lambda i: (0, 0)        # tiny weights: VMEM-resident across grid steps
    tile = lambda i: (0, i)

    qT = pl.pallas_call(
        _stage1_kernel,
        out_shape=jax.ShapeDtypeStruct((N_OUT, Bp), jnp.float32),
        grid=(nb,),
        in_specs=[
            pl.BlockSpec((10, BT), tile),
            pl.BlockSpec((3, 10), const),
            pl.BlockSpec((3, 1), const),
            pl.BlockSpec((3, 1), const),
            pl.BlockSpec((3, 1), const),
            pl.BlockSpec((3, 1), const),
            pl.BlockSpec((3, 1), const),
        ],
        out_specs=pl.BlockSpec((N_OUT, BT), tile),
        compiler_params=parallel,
        cost_estimate=pl.CostEstimate(flops=Bp * 200, transcendentals=Bp * 8,
                                      bytes_accessed=Bp * 72 + 1024),
    )(xT, params["w1"], params["b1c"], params["m0c"], params["m1c"],
      params["g0c"], params["g1c"])

    # BatchNorm1d(8) training-mode statistics over the *true* batch (padding excluded).
    qv = qT[:, :B]
    bn_mean = jnp.mean(qv, axis=1, keepdims=True)                      # (8, 1)
    bn_var = jnp.mean((qv - bn_mean) ** 2, axis=1, keepdims=True)      # biased, like torch BN
    bn_scale = jax.lax.rsqrt(bn_var + 1e-5)

    outT = pl.pallas_call(
        _stage2_kernel,
        out_shape=jax.ShapeDtypeStruct((10, Bp), jnp.float32),
        grid=(nb,),
        in_specs=[
            pl.BlockSpec((N_OUT, BT), tile),
            pl.BlockSpec((N_OUT, 1), const),
            pl.BlockSpec((N_OUT, 1), const),
            pl.BlockSpec((2 * N_OUT, N_OUT), const),
            pl.BlockSpec((10, N_OUT), const),
            pl.BlockSpec((10, 1), const),
        ],
        out_specs=pl.BlockSpec((10, BT), tile),
        compiler_params=parallel,
        cost_estimate=pl.CostEstimate(flops=Bp * 500, transcendentals=Bp * 2,
                                      bytes_accessed=Bp * 72 + 2048),
    )(qT, bn_mean, bn_scale, params["ur"], params["zw2"], params["b2c"])

    return outT[:, :B].T                                               # (B, 10)


# ----------------------------- deterministic parameter construction ----------------------
def make_params(key):
    k_w1, k_m, k_th, k_w2, k_dw = jax.random.split(key, 5)

    # nn.Linear(10, 3): xavier_uniform_ weight, bias filled with 0.01
    b1_bound = math.sqrt(6.0 / (10 + 3))
    W1 = jax.random.uniform(k_w1, (3, 10), jnp.float32, -b1_bound, b1_bound)
    b1c = jnp.full((3, 1), 0.01, jnp.float32)

    # fuzzy centers / widths ~ N(0, 1), shape (n_qubits, n_fuzzy_mem)
    m = jax.random.normal(k_m, (N_QUBITS, N_FUZZY_MEM), jnp.float32)
    theta = jax.random.normal(k_th, (N_QUBITS, N_FUZZY_MEM), jnp.float32)

    # nn.Linear(3, 10): xavier_uniform_ weight, bias 0.01
    b2_bound = math.sqrt(6.0 / (3 + 10))
    W2 = jax.random.uniform(k_w2, (10, 3), jnp.float32, -b2_bound, b2_bound)
    b2c = jnp.full((10, 1), 0.01, jnp.float32)

    # defuzz circuit weights ~ N(0, 1), shape (2, 9) -> fixed 8x8 unitary
    defuzz_w = jax.random.normal(k_dw, (DEFUZZ_LAYER, 3 * N_QUBITS), jnp.float32)
    U = build_defuzz_unitary(np.asarray(defuzz_w, dtype=np.float64))
    zs = jnp.asarray(build_zsign())                                    # (8, 3)

    return {
        "w1": W1,                                                       # (3, 10)
        "b1c": b1c,                                                     # (3, 1)
        "m0c": m[:, 0:1],                                               # (3, 1)
        "m1c": m[:, 1:2],                                               # (3, 1)
        "g0c": 1.0 / (2.0 * theta[:, 0:1] ** 2),                        # (3, 1)
        "g1c": 1.0 / (2.0 * theta[:, 1:2] ** 2),                        # (3, 1)
        "ur": jnp.asarray(np.concatenate([U.real, U.imag], 0), jnp.float32),  # (16, 8)
        "zw2": W2 @ zs.T,                                               # (10, 8) = W2 @ Zsign^T
        "b2c": b2c,                                                     # (10, 1)
    }


# ----------------------------- pure-JAX reference (batch-major) -------------------------
def reference_forward(x, params):
    h = x @ params["w1"].T + params["b1c"].T                            # (B, 3)
    mu = jnp.mean(h, axis=1, keepdims=True)
    var = jnp.mean((h - mu) ** 2, axis=1, keepdims=True)
    hn = (h - mu) / jnp.sqrt(var + 1e-5)
    f0 = jnp.exp(-((hn - params["m0c"].T) ** 2) * params["g0c"].T)
    f1 = jnp.exp(-((hn - params["m1c"].T) ** 2) * params["g1c"].T)
    cap = 0.99999 ** 2
    p0 = jnp.minimum(f0 + 1e-16, cap)
    p1 = jnp.minimum(f1 + 1e-16, cap)
    cols = []
    for i in range(N_OUT):
        bits = ((i >> 2) & 1, (i >> 1) & 1, i & 1)
        sel = [(p1 if bits[j] else p0)[:, j] for j in range(N_QUBITS)]
        cols.append(sel[0] * (1.0 - sel[1]) * (1.0 - sel[2]))
    q = jnp.stack(cols, axis=1)                                         # (B, 8)
    bmu = jnp.mean(q, axis=0, keepdims=True)
    bvar = jnp.mean((q - bmu) ** 2, axis=0, keepdims=True)
    y = (q - bmu) / jnp.sqrt(bvar + 1e-5)
    nrm = jnp.sqrt(jnp.sum(y * y, axis=1, keepdims=True))
    s = y / jnp.where(nrm > 0.0, nrm, 1.0)
    psi = s @ params["ur"].T                                            # (B, 16)
    probs = psi[:, :N_OUT] ** 2 + psi[:, N_OUT:] ** 2
    return probs @ params["zw2"].T + params["b2c"].T                    # (B, 10)


if __name__ == "__main__":
    key = jax.random.PRNGKey(0)
    k_x, k_p = jax.random.split(key)

    B = 8
    x = jax.random.normal(k_x, (B, 10), jnp.float32)
    params = make_params(k_p)

    out = qfnn_forward(x, params)
    out = jax.block_until_ready(out)

    assert out.shape == (B, 10) and out.dtype == jnp.float32
    assert bool(jnp.all(jnp.isfinite(out)))

    ref = reference_forward(x, params)
    np.testing.assert_allclose(np.asarray(out), np.asarray(ref), rtol=1e-3, atol=1e-3)

    print("KERNEL_OK")
</pallas_src>

<mosaic_0001>
module attributes {stable_mosaic.version = 11 : i64} {
  func.func @_stage1_kernel(%arg0: i32, %arg1: memref<10x128xf32, #tpu.memory_space<vmem>>, %arg2: memref<3x10xf32, #tpu.memory_space<vmem>>, %arg3: memref<3x1xf32, #tpu.memory_space<vmem>>, %arg4: memref<3x1xf32, #tpu.memory_space<vmem>>, %arg5: memref<3x1xf32, #tpu.memory_space<vmem>>, %arg6: memref<3x1xf32, #tpu.memory_space<vmem>>, %arg7: memref<3x1xf32, #tpu.memory_space<vmem>>, %arg8: memref<8x128xf32, #tpu.memory_space<vmem>>) attributes {dimension_semantics = [#tpu.dimension_semantics<parallel>], iteration_bounds = array<i64: 1>, scalar_prefetch = 0 : i64, scratch_operands = 0 : i64, tpu.core_type = #tpu.core_type<tc>, window_params = [{transform_indices = @transform_0, window_bounds = array<i64: 10, 128>}, {pipeline_mode = #tpu.pipeline_mode<synchronous>, transform_indices = @transform_1, window_bounds = array<i64: 3, 10>}, {pipeline_mode = #tpu.pipeline_mode<synchronous>, transform_indices = @transform_2, window_bounds = array<i64: 3, 1>}, {pipeline_mode = #tpu.pipeline_mode<synchronous>, transform_indices = @transform_3, window_bounds = array<i64: 3, 1>}, {pipeline_mode = #tpu.pipeline_mode<synchronous>, transform_indices = @transform_4, window_bounds = array<i64: 3, 1>}, {pipeline_mode = #tpu.pipeline_mode<synchronous>, transform_indices = @transform_5, window_bounds = array<i64: 3, 1>}, {pipeline_mode = #tpu.pipeline_mode<synchronous>, transform_indices = @transform_6, window_bounds = array<i64: 3, 1>}, {transform_indices = @transform_7, window_bounds = array<i64: 8, 128>}]} {
    %c0 = arith.constant 0 : index
    %c0_0 = arith.constant 0 : index
    %0 = vector.load %arg1[%c0, %c0_0] : memref<10x128xf32, #tpu.memory_space<vmem>>, vector<10x128xf32>
    %c0_1 = arith.constant 0 : index
    %c0_2 = arith.constant 0 : index
    %1 = vector.load %arg2[%c0_1, %c0_2] : memref<3x10xf32, #tpu.memory_space<vmem>>, vector<3x10xf32>
    %cst = arith.constant dense<0.000000e+00> : vector<3x128xf32>
    %2 = tpu.matmul %1, %0, %cst {dimension_numbers = #tpu.dot_dimension_numbers<[1], [0], [0], [1], [0, 0, 1, 1], [], []>} : vector<3x10xf32>, vector<10x128xf32>, vector<3x128xf32> -> vector<3x128xf32>
    %c0_3 = arith.constant 0 : index
    %c0_4 = arith.constant 0 : index
    %3 = vector.load %arg3[%c0_3, %c0_4] : memref<3x1xf32, #tpu.memory_space<vmem>>, vector<3x1xf32>
    %4 = vector.broadcast %3 : vector<3x1xf32> to vector<3x128xf32>
    %5 = arith.addf %2, %4 : vector<3x128xf32>
    %cst_5 = arith.constant dense<0.000000e+00> : vector<128xf32>
    %6 = vector.multi_reduction <add>, %5, %cst_5 [0] : vector<3x128xf32> to vector<128xf32>
    %7 = vector.shape_cast %6 : vector<128xf32> to vector<1x128xf32>
    %cst_6 = arith.constant 3.000000e+00 : f32
    %8 = vector.broadcast %cst_6 : f32 to vector<1x128xf32>
    %9 = arith.divf %7, %8 : vector<1x128xf32>
    %10 = vector.broadcast %9 : vector<1x128xf32> to vector<3x128xf32>
    %11 = arith.subf %5, %10 : vector<3x128xf32>
    %12 = arith.mulf %11, %11 : vector<3x128xf32>
    %cst_7 = arith.constant dense<0.000000e+00> : vector<128xf32>
    %13 = vector.multi_reduction <add>, %12, %cst_7 [0] : vector<3x128xf32> to vector<128xf32>
    %14 = vector.shape_cast %13 : vector<128xf32> to vector<1x128xf32>
    %cst_8 = arith.constant 3.000000e+00 : f32
    %15 = vector.broadcast %cst_8 : f32 to vector<1x128xf32>
    %16 = arith.divf %14, %15 : vector<1x128xf32>
    %17 = vector.broadcast %9 : vector<1x128xf32> to vector<3x128xf32>
    %18 = arith.subf %5, %17 : vector<3x128xf32>
    %cst_9 = arith.constant 9.99999974E-6 : f32
    %19 = vector.broadcast %cst_9 : f32 to vector<1x128xf32>
    %20 = arith.addf %16, %19 : vector<1x128xf32>
    %21 = math.rsqrt %20 : vector<1x128xf32>
    %22 = vector.broadcast %21 : vector<1x128xf32> to vector<3x128xf32>
    %23 = arith.mulf %18, %22 : vector<3x128xf32>
    %c0_10 = arith.constant 0 : index
    %c0_11 = arith.constant 0 : index
    %24 = vector.load %arg4[%c0_10, %c0_11] : memref<3x1xf32, #tpu.memory_space<vmem>>, vector<3x1xf32>
    %25 = vector.broadcast %24 : vector<3x1xf32> to vector<3x128xf32>
    %26 = arith.subf %23, %25 : vector<3x128xf32>
    %27 = arith.mulf %26, %26 : vector<3x128xf32>
    %cst_12 = arith.constant 0.000000e+00 : f32
    %28 = vector.broadcast %cst_12 : f32 to vector<3x128xf32>
    %29 = arith.subf %28, %27 : vector<3x128xf32>
    %c0_13 = arith.constant 0 : index
    %c0_14 = arith.constant 0 : index
    %30 = vector.load %arg6[%c0_13, %c0_14] : memref<3x1xf32, #tpu.memory_space<vmem>>, vector<3x1xf32>
    %31 = vector.broadcast %30 : vector<3x1xf32> to vector<3x128xf32>
    %32 = arith.mulf %29, %31 : vector<3x128xf32>
    %33 = math.exp %32 : vector<3x128xf32>
    %c0_15 = arith.constant 0 : index
    %c0_16 = arith.constant 0 : index
    %34 = vector.load %arg5[%c0_15, %c0_16] : memref<3x1xf32, #tpu.memory_space<vmem>>, vector<3x1xf32>
    %35 = vector.broadcast %34 : vector<3x1xf32> to vector<3x128xf32>
    %36 = arith.subf %23, %35 : vector<3x128xf32>
    %37 = arith.mulf %36, %36 : vector<3x128xf32>
    %cst_17 = arith.constant 0.000000e+00 : f32
    %38 = vector.broadcast %cst_17 : f32 to vector<3x128xf32>
    %39 = arith.subf %38, %37 : vector<3x128xf32>
    %c0_18 = arith.constant 0 : index
    %c0_19 = arith.constant 0 : index
    %40 = vector.load %arg7[%c0_18, %c0_19] : memref<3x1xf32, #tpu.memory_space<vmem>>, vector<3x1xf32>
    %41 = vector.broadcast %40 : vector<3x1xf32> to vector<3x128xf32>
    %42 = arith.mulf %39, %41 : vector<3x128xf32>
    %43 = math.exp %42 : vector<3x128xf32>
    %cst_20 = arith.constant 1.000000e-16 : f32
    %44 = vector.broadcast %cst_20 : f32 to vector<3x128xf32>
    %45 = arith.addf %33, %44 : vector<3x128xf32>
    %cst_21 = arith.constant 0.999979972 : f32
    %46 = vector.broadcast %cst_21 : f32 to vector<3x128xf32>
    %47 = arith.minimumf %45, %46 : vector<3x128xf32>
    %cst_22 = arith.constant 1.000000e-16 : f32
    %48 = vector.broadcast %cst_22 : f32 to vector<3x128xf32>
    %49 = arith.addf %43, %48 : vector<3x128xf32>
    %cst_23 = arith.constant 0.999979972 : f32
    %50 = vector.broadcast %cst_23 : f32 to vector<3x128xf32>
    %51 = arith.minimumf %49, %50 : vector<3x128xf32>
    %52 = vector.extract_strided_slice %47 {offsets = [0, 0], sizes = [1, 128], strides = [1, 1]} : vector<3x128xf32> to vector<1x128xf32>
    %53 = vector.extract_strided_slice %51 {offsets = [0, 0], sizes = [1, 128], strides = [1, 1]} : vector<3x128xf32> to vector<1x128xf32>
    %54 = vector.extract_strided_slice %47 {offsets = [1, 0], sizes = [1, 128], strides = [1, 1]} : vector<3x128xf32> to vector<1x128xf32>
    %cst_24 = arith.constant 1.000000e+00 : f32
    %55 = vector.broadcast %cst_24 : f32 to vector<1x128xf32>
    %56 = arith.subf %55, %54 : vector<1x128xf32>
    %57 = vector.extract_strided_slice %51 {offsets = [1, 0], sizes = [1, 128], strides = [1, 1]} : vector<3x128xf32> to vector<1x128xf32>
    %cst_25 = arith.constant 1.000000e+00 : f32
    %58 = vector.broadcast %cst_25 : f32 to vector<1x128xf32>
    %59 = arith.subf %58, %57 : vector<1x128xf32>
    %60 = vector.extract_strided_slice %47 {offsets = [2, 0], sizes = [1, 128], strides = [1, 1]} : vector<3x128xf32> to vector<1x128xf32>
    %cst_26 = arith.constant 1.000000e+00 : f32
    %61 = vector.broadcast %cst_26 : f32 to vector<1x128xf32>
    %62 = arith.subf %61, %60 : vector<1x128xf32>
    %63 = vector.extract_strided_slice %51 {offsets = [2, 0], sizes = [1, 128], strides = [1, 1]} : vector<3x128xf32> to vector<1x128xf32>
    %cst_27 = arith.constant 1.000000e+00 : f32
    %64 = vector.broadcast %cst_27 : f32 to vector<1x128xf32>
    %65 = arith.subf %64, %63 : vector<1x128xf32>
    %66 = tpu.iota {dimensions = array<i32: 0>} : vector<8x128xi32>
    %c2_i32 = arith.constant 2 : i32
    %67 = vector.broadcast %c2_i32 : i32 to vector<8x128xi32>
    %68 = arith.shrsi %66, %67 : vector<8x128xi32>
    %c1_i32 = arith.constant 1 : i32
    %69 = vector.broadcast %c1_i32 : i32 to vector<8x128xi32>
    %70 = arith.andi %68, %69 : vector<8x128xi32>
    %c1_i32_28 = arith.constant 1 : i32
    %71 = vector.broadcast %c1_i32_28 : i32 to vector<8x128xi32>
    %72 = arith.cmpi eq, %70, %71 : vector<8x128xi32>
    %73 = vector.shape_cast %53 : vector<1x128xf32> to vector<1x128xf32>
    %74 = vector.broadcast %73 : vector<1x128xf32> to vector<8x128xf32>
    %75 = vector.shape_cast %52 : vector<1x128xf32> to vector<1x128xf32>
    %76 = vector.broadcast %75 : vector<1x128xf32> to vector<8x128xf32>
    %77 = arith.select %72, %74, %76 : vector<8x128xi1>, vector<8x128xf32>
    %c1_i32_29 = arith.constant 1 : i32
    %78 = vector.broadcast %c1_i32_29 : i32 to vector<8x128xi32>
    %79 = arith.shrsi %66, %78 : vector<8x128xi32>
    %c1_i32_30 = arith.constant 1 : i32
    %80 = vector.broadcast %c1_i32_30 : i32 to vector<8x128xi32>
    %81 = arith.andi %79, %80 : vector<8x128xi32>
    %c1_i32_31 = arith.constant 1 : i32
    %82 = vector.broadcast %c1_i32_31 : i32 to vector<8x128xi32>
    %83 = arith.cmpi eq, %81, %82 : vector<8x128xi32>
    %84 = vector.shape_cast %59 : vector<1x128xf32> to vector<1x128xf32>
    %85 = vector.broadcast %84 : vector<1x128xf32> to vector<8x128xf32>
    %86 = vector.shape_cast %56 : vector<1x128xf32> to vector<1x128xf32>
    %87 = vector.broadcast %86 : vector<1x128xf32> to vector<8x128xf32>
    %88 = arith.select %83, %85, %87 : vector<8x128xi1>, vector<8x128xf32>
    %c1_i32_32 = arith.constant 1 : i32
    %89 = vector.broadcast %c1_i32_32 : i32 to vector<8x128xi32>
    %90 = arith.andi %66, %89 : vector<8x128xi32>
    %c1_i32_33 = arith.constant 1 : i32
    %91 = vector.broadcast %c1_i32_33 : i32 to vector<8x128xi32>
    %92 = arith.cmpi eq, %90, %91 : vector<8x128xi32>
    %93 = vector.shape_cast %65 : vector<1x128xf32> to vector<1x128xf32>
    %94 = vector.broadcast %93 : vector<1x128xf32> to vector<8x128xf32>
    %95 = vector.shape_cast %62 : vector<1x128xf32> to vector<1x128xf32>
    %96 = vector.broadcast %95 : vector<1x128xf32> to vector<8x128xf32>
    %97 = arith.select %92, %94, %96 : vector<8x128xi1>, vector<8x128xf32>
    %98 = arith.mulf %77, %88 : vector<8x128xf32>
    %99 = arith.mulf %98, %97 : vector<8x128xf32>
    %c0_34 = arith.constant 0 : index
    %c0_35 = arith.constant 0 : index
    %100 = vector.load %arg8[%c0_34, %c0_35] : memref<8x128xf32, #tpu.memory_space<vmem>>, vector<8x128xf32>
    tpu.vector_store %arg8[%c0_34, %c0_35], %99 {strides = array<i32>} : memref<8x128xf32, #tpu.memory_space<vmem>>, vector<8x128xf32>,
    return
  }
  func.func @transform_0(%arg0: i32) -> (i32, i32) {
    %c0_i32 = arith.constant 0 : i32
    %c0_i32_0 = arith.constant 0 : i32
    return %c0_i32, %arg0 : i32, i32
  }
  func.func @transform_1(%arg0: i32) -> (i32, i32) {
    %c0_i32 = arith.constant 0 : i32
    %c0_i32_0 = arith.constant 0 : i32
    %c0_i32_1 = arith.constant 0 : i32
    return %c0_i32, %c0_i32_0 : i32, i32
  }
  func.func @transform_2(%arg0: i32) -> (i32, i32) {
    %c0_i32 = arith.constant 0 : i32
    %c0_i32_0 = arith.constant 0 : i32
    %c0_i32_1 = arith.constant 0 : i32
    return %c0_i32, %c0_i32_0 : i32, i32
  }
  func.func @transform_3(%arg0: i32) -> (i32, i32) {
    %c0_i32 = arith.constant 0 : i32
    %c0_i32_0 = arith.constant 0 : i32
    %c0_i32_1 = arith.constant 0 : i32
    return %c0_i32, %c0_i32_0 : i32, i32
  }
  func.func @transform_4(%arg0: i32) -> (i32, i32) {
    %c0_i32 = arith.constant 0 : i32
    %c0_i32_0 = arith.constant 0 : i32
    %c0_i32_1 = arith.constant 0 : i32
    return %c0_i32, %c0_i32_0 : i32, i32
  }
  func.func @transform_5(%arg0: i32) -> (i32, i32) {
    %c0_i32 = arith.constant 0 : i32
    %c0_i32_0 = arith.constant 0 : i32
    %c0_i32_1 = arith.constant 0 : i32
    return %c0_i32, %c0_i32_0 : i32, i32
  }
  func.func @transform_6(%arg0: i32) -> (i32, i32) {
    %c0_i32 = arith.constant 0 : i32
    %c0_i32_0 = arith.constant 0 : i32
    %c0_i32_1 = arith.constant 0 : i32
    return %c0_i32, %c0_i32_0 : i32, i32
  }
  func.func @transform_7(%arg0: i32) -> (i32, i32) {
    %c0_i32 = arith.constant 0 : i32
    %c0_i32_0 = arith.constant 0 : i32
    return %c0_i32, %arg0 : i32, i32
  }
}

module attributes {stable_mosaic.version = 11 : i64} {
  func.func @_stage2_kernel(%arg0: i32, %arg1: memref<8x128xf32, #tpu.memory_space<vmem>>, %arg2: memref<8x1xf32, #tpu.memory_space<vmem>>, %arg3: memref<8x1xf32, #tpu.memory_space<vmem>>, %arg4: memref<16x8xf32, #tpu.memory_space<vmem>>, %arg5: memref<10x8xf32, #tpu.memory_space<vmem>>, %arg6: memref<10x1xf32, #tpu.memory_space<vmem>>, %arg7: memref<10x128xf32, #tpu.memory_space<vmem>>) attributes {dimension_semantics = [#tpu.dimension_semantics<parallel>], iteration_bounds = array<i64: 1>, scalar_prefetch = 0 : i64, scratch_operands = 0 : i64, tpu.core_type = #tpu.core_type<tc>, window_params = [{transform_indices = @transform_0, window_bounds = array<i64: 8, 128>}, {pipeline_mode = #tpu.pipeline_mode<synchronous>, transform_indices = @transform_1, window_bounds = array<i64: 8, 1>}, {pipeline_mode = #tpu.pipeline_mode<synchronous>, transform_indices = @transform_2, window_bounds = array<i64: 8, 1>}, {pipeline_mode = #tpu.pipeline_mode<synchronous>, transform_indices = @transform_3, window_bounds = array<i64: 16, 8>}, {pipeline_mode = #tpu.pipeline_mode<synchronous>, transform_indices = @transform_4, window_bounds = array<i64: 10, 8>}, {pipeline_mode = #tpu.pipeline_mode<synchronous>, transform_indices = @transform_5, window_bounds = array<i64: 10, 1>}, {transform_indices = @transform_6, window_bounds = array<i64: 10, 128>}]} {
    %c0 = arith.constant 0 : index
    %c0_0 = arith.constant 0 : index
    %0 = vector.load %arg1[%c0, %c0_0] : memref<8x128xf32, #tpu.memory_space<vmem>>, vector<8x128xf32>
    %c0_1 = arith.constant 0 : index
    %c0_2 = arith.constant 0 : index
    %1 = vector.load %arg2[%c0_1, %c0_2] : memref<8x1xf32, #tpu.memory_space<vmem>>, vector<8x1xf32>
    %2 = vector.broadcast %1 : vector<8x1xf32> to vector<8x128xf32>
    %3 = arith.subf %0, %2 : vector<8x128xf32>
    %c0_3 = arith.constant 0 : index
    %c0_4 = arith.constant 0 : index
    %4 = vector.load %arg3[%c0_3, %c0_4] : memref<8x1xf32, #tpu.memory_space<vmem>>, vector<8x1xf32>
    %5 = vector.broadcast %4 : vector<8x1xf32> to vector<8x128xf32>
    %6 = arith.mulf %3, %5 : vector<8x128xf32>
    %7 = arith.mulf %6, %6 : vector<8x128xf32>
    %cst = arith.constant dense<0.000000e+00> : vector<128xf32>
    %8 = vector.multi_reduction <add>, %7, %cst [0] : vector<8x128xf32> to vector<128xf32>
    %9 = vector.shape_cast %8 : vector<128xf32> to vector<1x128xf32>
    %cst_5 = arith.constant 0.000000e+00 : f32
    %10 = vector.broadcast %cst_5 : f32 to vector<1x128xf32>
    %11 = arith.cmpf ogt, %9, %10 : vector<1x128xf32>
    %12 = math.rsqrt %9 : vector<1x128xf32>
    %cst_6 = arith.constant 1.000000e+00 : f32
    %13 = vector.broadcast %cst_6 : f32 to vector<1x128xf32>
    %14 = arith.select %11, %12, %13 : vector<1x128xi1>, vector<1x128xf32>
    %15 = vector.broadcast %14 : vector<1x128xf32> to vector<8x128xf32>
    %16 = arith.mulf %6, %15 : vector<8x128xf32>
    %c0_7 = arith.constant 0 : index
    %c0_8 = arith.constant 0 : index
    %17 = vector.load %arg4[%c0_7, %c0_8] : memref<16x8xf32, #tpu.memory_space<vmem>>, vector<16x8xf32>
    %cst_9 = arith.constant dense<0.000000e+00> : vector<16x128xf32>
    %18 = tpu.matmul %17, %16, %cst_9 {dimension_numbers = #tpu.dot_dimension_numbers<[1], [0], [0], [1], [0, 0, 1, 1], [], []>} : vector<16x8xf32>, vector<8x128xf32>, vector<16x128xf32> -> vector<16x128xf32>
    %19 = arith.mulf %18, %18 : vector<16x128xf32>
    %20 = vector.extract_strided_slice %19 {offsets = [0, 0], sizes = [8, 128], strides = [1, 1]} : vector<16x128xf32> to vector<8x128xf32>
    %21 = vector.extract_strided_slice %19 {offsets = [8, 0], sizes = [8, 128], strides = [1, 1]} : vector<16x128xf32> to vector<8x128xf32>
    %22 = arith.addf %20, %21 : vector<8x128xf32>
    %c0_10 = arith.constant 0 : index
    %c0_11 = arith.constant 0 : index
    %23 = vector.load %arg5[%c0_10, %c0_11] : memref<10x8xf32, #tpu.memory_space<vmem>>, vector<10x8xf32>
    %cst_12 = arith.constant dense<0.000000e+00> : vector<10x128xf32>
    %24 = tpu.matmul %23, %22, %cst_12 {dimension_numbers = #tpu.dot_dimension_numbers<[1], [0], [0], [1], [0, 0, 1, 1], [], []>} : vector<10x8xf32>, vector<8x128xf32>, vector<10x128xf32> -> vector<10x128xf32>
    %c0_13 = arith.constant 0 : index
    %c0_14 = arith.constant 0 : index
    %25 = vector.load %arg6[%c0_13, %c0_14] : memref<10x1xf32, #tpu.memory_space<vmem>>, vector<10x1xf32>
    %26 = vector.broadcast %25 : vector<10x1xf32> to vector<10x128xf32>
    %27 = arith.addf %24, %26 : vector<10x128xf32>
    %c0_15 = arith.constant 0 : index
    %c0_16 = arith.constant 0 : index
    %28 = vector.load %arg7[%c0_15, %c0_16] : memref<10x128xf32, #tpu.memory_space<vmem>>, vector<10x128xf32>
    tpu.vector_store %arg7[%c0_15, %c0_16], %27 {strides = array<i32>} : memref<10x128xf32, #tpu.memory_space<vmem>>, vector<10x128xf32>,
    return
  }
  func.func @transform_0(%arg0: i32) -> (i32, i32) {
    %c0_i32 = arith.constant 0 : i32
    %c0_i32_0 = arith.constant 0 : i32
    return %c0_i32, %arg0 : i32, i32
  }
  func.func @transform_1(%arg0: i32) -> (i32, i32) {
    %c0_i32 = arith.constant 0 : i32
    %c0_i32_0 = arith.constant 0 : i32
    %c0_i32_1 = arith.constant 0 : i32
    return %c0_i32, %c0_i32_0 : i32, i32
  }
  func.func @transform_2(%arg0: i32) -> (i32, i32) {
    %c0_i32 = arith.constant 0 : i32
    %c0_i32_0 = arith.constant 0 : i32
    %c0_i32_1 = arith.constant 0 : i32
    return %c0_i32, %c0_i32_0 : i32, i32
  }
  func.func @transform_3(%arg0: i32) -> (i32, i32) {
    %c0_i32 = arith.constant 0 : i32
    %c0_i32_0 = arith.constant 0 : i32
    %c0_i32_1 = arith.constant 0 : i32
    return %c0_i32, %c0_i32_0 : i32, i32
  }
  func.func @transform_4(%arg0: i32) -> (i32, i32) {
    %c0_i32 = arith.constant 0 : i32
    %c0_i32_0 = arith.constant 0 : i32
    %c0_i32_1 = arith.constant 0 : i32
    return %c0_i32, %c0_i32_0 : i32, i32
  }
  func.func @transform_5(%arg0: i32) -> (i32, i32) {
    %c0_i32 = arith.constant 0 : i32
    %c0_i32_0 = arith.constant 0 : i32
    %c0_i32_1 = arith.constant 0 : i32
    return %c0_i32, %c0_i32_0 : i32, i32
  }
  func.func @transform_6(%arg0: i32) -> (i32, i32) {
    %c0_i32 = arith.constant 0 : i32
    %c0_i32_0 = arith.constant 0 : i32
    return %c0_i32, %arg0 : i32, i32
  }
}

</mosaic_0001>

<llo_original>
// kernel: qfnn_forward.3
$region0: #{qfnn_forward.3}
  #allocation0 [shape = 'u32[]', space=smem, size = 0x4, offset = 0x4, fixed_abs, tag = 'smem constant byte address 0x4 - core index']
  #allocation1 [shape = 'u32[144,128]{1,0:T(1,128)}', space=vmem, size = 0x12000, scoped, tag = 'internal scratch']
  %s0 = inlined_call_operand.vmem [shape: f32[8,128], index: 0, kind: input, shape index: {}]
  %s1 = inlined_call_operand.vmem [shape: f32[8,1], index: 1, kind: input, shape index: {}]
  %s2 = inlined_call_operand.vmem [shape: f32[8,1], index: 2, kind: input, shape index: {}]
  %s3 = inlined_call_operand.vmem [shape: f32[16,8], index: 3, kind: input, shape index: {}]
  %s4 = inlined_call_operand.vmem [shape: f32[10,8], index: 4, kind: input, shape index: {}]
  %s5 = inlined_call_operand.vmem [shape: f32[10,1], index: 5, kind: input, shape index: {}]
  %s6 = inlined_call_operand.vmem [shape: f32[10,128], index: 6, kind: output, shape index: {}]
  %s7 = sld [smem:[#allocation0]]
  $region34: #{qfnn_forward.3} parent=0
    _
  %s9 = ssub.s32 1, %s7
  %s10 = scalar_select 0, %s9, %s7
  // Predicated region
  $region2: #{qfnn_forward.3} parent=0 // pred_check
    _
  $region3: #{qfnn_forward.3} parent=0 // pred_check_branch
    %12 = sbr.rel (0) target = $region5
  $region4: #{qfnn_forward.3} parent=0 // pred_region
    _
  $region5: #{qfnn_forward.3} parent=0 // pred_fallthru
    _
  // Predicated region
  $region6: #{qfnn_forward.3} parent=0 // pred_check
    _
  $region7: #{qfnn_forward.3} parent=0 // pred_check_branch
    %14 = sbr.rel (0) target = $region9
  $region8: #{qfnn_forward.3} parent=0 // pred_region
    _
  $region9: #{qfnn_forward.3} parent=0 // pred_fallthru
    _
  // Predicated region
  $region10: #{qfnn_forward.3} parent=0 // pred_check
    _
  $region11: #{qfnn_forward.3} parent=0 // pred_check_branch
    %16 = sbr.rel (0) target = $region13
  $region12: #{qfnn_forward.3} parent=0 // pred_region
    _
  $region13: #{qfnn_forward.3} parent=0 // pred_fallthru
    _
  // Predicated region
  $region14: #{qfnn_forward.3} parent=0 // pred_check
    _
  $region15: #{qfnn_forward.3} parent=0 // pred_check_branch
    %18 = sbr.rel (0) target = $region17
  $region16: #{qfnn_forward.3} parent=0 // pred_region
    _
  $region17: #{qfnn_forward.3} parent=0 // pred_fallthru
    _
  // Predicated region
  $region18: #{qfnn_forward.3} parent=0 // pred_check
    _
  $region19: #{qfnn_forward.3} parent=0 // pred_check_branch
    %20 = sbr.rel (0) target = $region21
  $region20: #{qfnn_forward.3} parent=0 // pred_region
    _
  $region21: #{qfnn_forward.3} parent=0 // pred_fallthru
    _
  // Predicated region
  $region22: #{qfnn_forward.3} parent=0 // pred_check
    _
  $region23: #{qfnn_forward.3} parent=0 // pred_check_branch
    %22 = sbr.rel (0) target = $region25
  $region24: #{qfnn_forward.3} parent=0 // pred_region
    _
  $region25: #{qfnn_forward.3} parent=0 // pred_fallthru
    _
  %v23 = vld [vmem:[%s0] sm:$0xff]
  %v24 = vld [vmem:[%s1] sm:$0xff]
  %26 = vset.pattern.permute.xlu0 0
  %27 = vperm.xlu0 %26, %v24
  %v28 = vpop.permute.xlu0 %27
  %v30 = vsub.f32 %v23, %v28
  %v31 = vld [vmem:[%s2] sm:$0xff]
  %33 = vset.pattern.permute.xlu0 0
  %34 = vperm.xlu0 %33, %v31
  %v35 = vpop.permute.xlu0 %34
  %v37 = vmul.f32 %v30, %v35
  %v38 = vmul.f32 %v37, %v37
  %v39 = vrot.slane %v38, 4
  %v40 = vadd.f32 %v38, %v39
  %v41 = vrot.slane %v40, 2
  %v42 = vadd.f32 %v40, %v41
  %v43 = vrot.slane %v42, 1
  %v44 = vadd.f32 %v42, %v43
  %vm45 = vcmp.gt.f32.partialorder %v44, 0.0
  %v46 = vrsqrt.pop %v44
  %v47 = vsel %vm45, %v46, 1.0
  %v48 = vmul.f32 %v37, %v47
  %v49 = vld [vmem:[%s3] sm:$0xff]
  %v50 = vld [vmem:[%s3 + $0x8] sm:$0xff]
  %vm51 = vcmask 64512
  %v53 = vsel %vm51, %v49, 0
  %v56 = vsel %vm51, %v50, 0
  %58 = vmatprep.subr.mxu0 0.0
  %59 = vmatpush1.msra.mxu0 %v48
  %60 = vmatprep.subr.mxu0 0.0
  %61 = vmatpush1.msra.mxu0 0.0
  %62 = vmatprep.subr.mxu0 0.0
  %63 = vmatpush1.msra.mxu0 0.0
  %64 = vmatprep.subr.mxu0 0.0
  %65 = vmatpush1.msra.mxu0 0.0
  %66 = vmatprep.subr.mxu0 0.0
  %67 = vmatpush1.msra.mxu0 0.0
  %68 = vmatprep.subr.mxu0 0.0
  %69 = vmatpush1.msra.mxu0 0.0
  %70 = vmatprep.subr.mxu0 0.0
  %71 = vmatpush1.msra.mxu0 0.0
  %72 = vmatprep.subr.mxu0 0.0
  %73 = vmatpush1.msra.mxu0 0.0
  %74 = vmatprep.subr.mxu0 0.0
  %75 = vmatpush1.msra.mxu0 0.0
  %76 = vmatprep.subr.mxu0 0.0
  %77 = vmatpush1.msra.mxu0 0.0
  %78 = vmatprep.subr.mxu0 0.0
  %79 = vmatpush1.msra.mxu0 0.0
  %80 = vmatprep.subr.mxu0 0.0
  %81 = vmatpush1.msra.mxu0 0.0
  %82 = vmatprep.subr.mxu0 0.0
  %83 = vmatpush1.msra.mxu0 0.0
  %84 = vmatprep.subr.mxu0 0.0
  %85 = vmatpush1.msra.mxu0 0.0
  %86 = vmatprep.subr.mxu0 0.0
  %87 = vmatpush1.msra.mxu0 0.0
  %88 = vmatprep.subr.mxu0 0.0
  %89 = vmatpush1.msra.mxu0 0.0
  %90 = vmatprep.subr.mxu0 0.0
  %91 = vmatpush1.msra.mxu0 0.0
  %92 = vmatprep.subr.mxu0 0.0
  %93 = vmatpush1.msra.mxu0 0.0
  %94 = vmatprep.subr.mxu0 0.0
  %95 = vmatpush1.msra.mxu0 0.0
  %96 = vmatprep.subr.mxu0 0.0
  %97 = vmatpush1.msra.mxu0 0.0
  %98 = vmatprep.subr.mxu0 0.0
  %99 = vmatpush1.msra.mxu0 0.0
  %100 = vmatprep.subr.mxu0 0.0
  %101 = vmatpush1.msra.mxu0 0.0
  %102 = vmatprep.subr.mxu0 0.0
  %103 = vmatpush1.msra.mxu0 0.0
  %104 = vmatprep.subr.mxu0 0.0
  %105 = vmatpush1.msra.mxu0 0.0
  %106 = vmatprep.subr.mxu0 0.0
  %107 = vmatpush1.msra.mxu0 0.0
  %108 = vmatprep.subr.mxu0 0.0
  %109 = vmatpush1.msra.mxu0 0.0
  %110 = vmatprep.subr.mxu0 0.0
  %111 = vmatpush1.msra.mxu0 0.0
  %112 = vmatprep.subr.mxu0 0.0
  %113 = vmatpush1.msra.mxu0 0.0
  %114 = vmatprep.subr.mxu0 0.0
  %115 = vmatpush1.msra.mxu0 0.0
  %116 = vmatprep.subr.mxu0 0.0
  %117 = vmatpush1.msra.mxu0 0.0
  %118 = vmatprep.subr.mxu0 0.0
  %119 = vmatpush1.msra.mxu0 0.0
  %120 = vmatprep.subr.mxu0 0.0
  %121 = vmatpush1.msra.mxu0 0.0
  %122 = vmatprep.mubr.f32.mxu0 0.0
  %123 = vmatmul.mubr.f32.gmra.mrb[0].mxu0 %v53
  %v124 = vpop.f32.mrb[0].mxu0
  %v125 = vadd.f32 0.0, %v124
  %v126 = vpop.f32.mrb[0].mxu0
  %127 = vmatprep.mubr.f32.mxu0 0.0
  %128 = vmatmul.mubr.f32.gmra.mrb[0].mxu0 %v56
  %v129 = vpop.f32.mrb[0].mxu0
  %v130 = vadd.f32 0.0, %v129
  %v131 = vpop.f32.mrb[0].mxu0
  %132 = vdwg.mxu0
  %v133 = vmul.f32 %v125, %v125
  %v134 = vmul.f32 %v130, %v130
  %v135 = vadd.f32 %v133, %v134
  %v136 = vld [vmem:[%s4] sm:$0xff]
  %v137 = vld [vmem:[%s4 + $0x8] sm:$0x3]
  %v138 = vld [vmem:[%s5] sm:$0xff]
  %v139 = vld [vmem:[%s5 + $0x8] sm:$0x3]
  %141 = vset.pattern.permute.xlu0 0
  %142 = vperm.xlu0 %141, %v138
  %v143 = vpop.permute.xlu0 %142
  %146 = vset.pattern.permute.xlu0 0
  %147 = vperm.xlu0 %146, %v139
  %v148 = vpop.permute.xlu0 %147
  %v151 = vsel %vm51, %v136, 0
  %v154 = vsel %vm51, %v137, 0
  %156 = vmatprep.subr.mxu0 0.0
  %157 = vmatpush1.msra.mxu0 %v135
  %158 = vmatprep.subr.mxu0 0.0
  %159 = vmatpush1.msra.mxu0 0.0
  %160 = vmatprep.subr.mxu0 0.0
  %161 = vmatpush1.msra.mxu0 0.0
  %162 = vmatprep.subr.mxu0 0.0
  %163 = vmatpush1.msra.mxu0 0.0
  %164 = vmatprep.subr.mxu0 0.0
  %165 = vmatpush1.msra.mxu0 0.0
  %166 = vmatprep.subr.mxu0 0.0
  %167 = vmatpush1.msra.mxu0 0.0
  %168 = vmatprep.subr.mxu0 0.0
  %169 = vmatpush1.msra.mxu0 0.0
  %170 = vmatprep.subr.mxu0 0.0
  %171 = vmatpush1.msra.mxu0 0.0
  %172 = vmatprep.subr.mxu0 0.0
  %173 = vmatpush1.msra.mxu0 0.0
  %174 = vmatprep.subr.mxu0 0.0
  %175 = vmatpush1.msra.mxu0 0.0
  %176 = vmatprep.subr.mxu0 0.0
  %177 = vmatpush1.msra.mxu0 0.0
  %178 = vmatprep.subr.mxu0 0.0
  %179 = vmatpush1.msra.mxu0 0.0
  %180 = vmatprep.subr.mxu0 0.0
  %181 = vmatpush1.msra.mxu0 0.0
  %182 = vmatprep.subr.mxu0 0.0
  %183 = vmatpush1.msra.mxu0 0.0
  %184 = vmatprep.subr.mxu0 0.0
  %185 = vmatpush1.msra.mxu0 0.0
  %186 = vmatprep.subr.mxu0 0.0
  %187 = vmatpush1.msra.mxu0 0.0
  %188 = vmatprep.subr.mxu0 0.0
  %189 = vmatpush1.msra.mxu0 0.0
  %190 = vmatprep.subr.mxu0 0.0
  %191 = vmatpush1.msra.mxu0 0.0
  %192 = vmatprep.subr.mxu0 0.0
  %193 = vmatpush1.msra.mxu0 0.0
  %194 = vmatprep.subr.mxu0 0.0
  %195 = vmatpush1.msra.mxu0 0.0
  %196 = vmatprep.subr.mxu0 0.0
  %197 = vmatpush1.msra.mxu0 0.0
  %198 = vmatprep.subr.mxu0 0.0
  %199 = vmatpush1.msra.mxu0 0.0
  %200 = vmatprep.subr.mxu0 0.0
  %201 = vmatpush1.msra.mxu0 0.0
  %202 = vmatprep.subr.mxu0 0.0
  %203 = vmatpush1.msra.mxu0 0.0
  %204 = vmatprep.subr.mxu0 0.0
  %205 = vmatpush1.msra.mxu0 0.0
  %206 = vmatprep.subr.mxu0 0.0
  %207 = vmatpush1.msra.mxu0 0.0
  %208 = vmatprep.subr.mxu0 0.0
  %209 = vmatpush1.msra.mxu0 0.0
  %210 = vmatprep.subr.mxu0 0.0
  %211 = vmatpush1.msra.mxu0 0.0
  %212 = vmatprep.subr.mxu0 0.0
  %213 = vmatpush1.msra.mxu0 0.0
  %214 = vmatprep.subr.mxu0 0.0
  %215 = vmatpush1.msra.mxu0 0.0
  %216 = vmatprep.subr.mxu0 0.0
  %217 = vmatpush1.msra.mxu0 0.0
  %218 = vmatprep.subr.mxu0 0.0
  %219 = vmatpush1.msra.mxu0 0.0
  %220 = vmatprep.mubr.f32.mxu0 0.0
  %221 = vmatmul.mubr.f32.gmra.mrb[0].mxu0 %v151
  %v222 = vpop.f32.mrb[0].mxu0
  %v223 = vadd.f32 %v143, %v222
  %v224 = vpop.f32.mrb[0].mxu0
  %225 = vmatprep.mubr.f32.mxu0 0.0
  %226 = vmatmul.mubr.f32.gmra.mrb[0].mxu0 %v154
  %v227 = vpop.f32.mrb[0].mxu0
  %v228 = vadd.f32 %v148, %v227
  %v229 = vpop.f32.mrb[0].mxu0
  %230 = vdwg.mxu0
  %231 = vst [vmem:[%s6] sm:$0xff] %v223
  %232 = vst [vmem:[%s6 + $0x8] sm:$0x3] %v228
  // Predicated region
  $region26: #{qfnn_forward.3} parent=0 // pred_check
    _
  $region27: #{qfnn_forward.3} parent=0 // pred_check_branch
    %234 = sbr.rel (0) target = $region29
  $region28: #{qfnn_forward.3} parent=0 // pred_region
    _
  $region29: #{qfnn_forward.3} parent=0 // pred_fallthru
    _
  // Predicated region
  $region30: #{qfnn_forward.3} parent=0 // pred_check
    _
  $region31: #{qfnn_forward.3} parent=0 // pred_check_branch
    %236 = sbr.rel (0) target = $region33
  $region32: #{qfnn_forward.3} parent=0 // pred_region
    _
  $region33: #{qfnn_forward.3} parent=0 // pred_fallthru
    _

// kernel: qfnn_forward.2
$region0: #{qfnn_forward.2}
  #allocation0 [shape = 'u32[]', space=smem, size = 0x4, offset = 0x4, fixed_abs, tag = 'smem constant byte address 0x4 - core index']
  #allocation1 [shape = 'u32[144,128]{1,0:T(1,128)}', space=vmem, size = 0x12000, scoped, tag = 'internal scratch']
  %s0 = inlined_call_operand.vmem [shape: f32[10,128], index: 0, kind: input, shape index: {}]
  %s1 = inlined_call_operand.vmem [shape: f32[3,10], index: 1, kind: input, shape index: {}]
  %s2 = inlined_call_operand.vmem [shape: f32[3,1], index: 2, kind: input, shape index: {}]
  %s3 = inlined_call_operand.vmem [shape: f32[3,1], index: 3, kind: input, shape index: {}]
  %s4 = inlined_call_operand.vmem [shape: f32[3,1], index: 4, kind: input, shape index: {}]
  %s5 = inlined_call_operand.vmem [shape: f32[3,1], index: 5, kind: input, shape index: {}]
  %s6 = inlined_call_operand.vmem [shape: f32[3,1], index: 6, kind: input, shape index: {}]
  %s7 = inlined_call_operand.vmem [shape: f32[8,128], index: 7, kind: output, shape index: {}]
  %s8 = sld [smem:[#allocation0]]
  $region38: #{qfnn_forward.2} parent=0
    _
  %s10 = ssub.s32 1, %s8
  %s11 = scalar_select 0, %s10, %s8
  // Predicated region
  $region2: #{qfnn_forward.2} parent=0 // pred_check
    _
  $region3: #{qfnn_forward.2} parent=0 // pred_check_branch
    %13 = sbr.rel (0) target = $region5
  $region4: #{qfnn_forward.2} parent=0 // pred_region
    _
  $region5: #{qfnn_forward.2} parent=0 // pred_fallthru
    _
  // Predicated region
  $region6: #{qfnn_forward.2} parent=0 // pred_check
    _
  $region7: #{qfnn_forward.2} parent=0 // pred_check_branch
    %15 = sbr.rel (0) target = $region9
  $region8: #{qfnn_forward.2} parent=0 // pred_region
    _
  $region9: #{qfnn_forward.2} parent=0 // pred_fallthru
    _
  // Predicated region
  $region10: #{qfnn_forward.2} parent=0 // pred_check
    _
  $region11: #{qfnn_forward.2} parent=0 // pred_check_branch
    %17 = sbr.rel (0) target = $region13
  $region12: #{qfnn_forward.2} parent=0 // pred_region
    _
  $region13: #{qfnn_forward.2} parent=0 // pred_fallthru
    _
  // Predicated region
  $region14: #{qfnn_forward.2} parent=0 // pred_check
    _
  $region15: #{qfnn_forward.2} parent=0 // pred_check_branch
    %19 = sbr.rel (0) target = $region17
  $region16: #{qfnn_forward.2} parent=0 // pred_region
    _
  $region17: #{qfnn_forward.2} parent=0 // pred_fallthru
    _
  // Predicated region
  $region18: #{qfnn_forward.2} parent=0 // pred_check
    _
  $region19: #{qfnn_forward.2} parent=0 // pred_check_branch
    %21 = sbr.rel (0) target = $region21
  $region20: #{qfnn_forward.2} parent=0 // pred_region
    _
  $region21: #{qfnn_forward.2} parent=0 // pred_fallthru
    _
  // Predicated region
  $region22: #{qfnn_forward.2} parent=0 // pred_check
    _
  $region23: #{qfnn_forward.2} parent=0 // pred_check_branch
    %23 = sbr.rel (0) target = $region25
  $region24: #{qfnn_forward.2} parent=0 // pred_region
    _
  $region25: #{qfnn_forward.2} parent=0 // pred_fallthru
    _
  // Predicated region
  $region26: #{qfnn_forward.2} parent=0 // pred_check
    _
  $region27: #{qfnn_forward.2} parent=0 // pred_check_branch
    %25 = sbr.rel (0) target = $region29
  $region28: #{qfnn_forward.2} parent=0 // pred_region
    _
  $region29: #{qfnn_forward.2} parent=0 // pred_fallthru
    _
  %v26 = vld [vmem:[%s0] sm:$0xff]
  %v27 = vld [vmem:[%s0 + $0x8] sm:$0x3]
  %v28 = vld [vmem:[%s1] sm:$0x7]
  %v29 = vld [vmem:[%s2] sm:$0x7]
  %31 = vset.pattern.permute.xlu0 0
  %32 = vperm.xlu0 %31, %v29
  %v33 = vpop.permute.xlu0 %32
  %vm35 = vcmask 80896
  %v37 = vsel %vm35, %v28, 0
  %vm39 = vcmask 1041408
  %v41 = vsel %vm39, %v27, 0
  %43 = vmatprep.subr.mxu0 0.0
  %44 = vmatpush1.msra.mxu0 %v26
  %45 = vmatprep.subr.mxu0 0.0
  %46 = vmatpush1.msra.mxu0 %v41
  %47 = vmatprep.subr.mxu0 0.0
  %48 = vmatpush1.msra.mxu0 0.0
  %49 = vmatprep.subr.mxu0 0.0
  %50 = vmatpush1.msra.mxu0 0.0
  %51 = vmatprep.subr.mxu0 0.0
  %52 = vmatpush1.msra.mxu0 0.0
  %53 = vmatprep.subr.mxu0 0.0
  %54 = vmatpush1.msra.mxu0 0.0
  %55 = vmatprep.subr.mxu0 0.0
  %56 = vmatpush1.msra.mxu0 0.0
  %57 = vmatprep.subr.mxu0 0.0
  %58 = vmatpush1.msra.mxu0 0.0
  %59 = vmatprep.subr.mxu0 0.0
  %60 = vmatpush1.msra.mxu0 0.0
  %61 = vmatprep.subr.mxu0 0.0
  %62 = vmatpush1.msra.mxu0 0.0
  %63 = vmatprep.subr.mxu0 0.0
  %64 = vmatpush1.msra.mxu0 0.0
  %65 = vmatprep.subr.mxu0 0.0
  %66 = vmatpush1.msra.mxu0 0.0
  %67 = vmatprep.subr.mxu0 0.0
  %68 = vmatpush1.msra.mxu0 0.0
  %69 = vmatprep.subr.mxu0 0.0
  %70 = vmatpush1.msra.mxu0 0.0
  %71 = vmatprep.subr.mxu0 0.0
  %72 = vmatpush1.msra.mxu0 0.0
  %73 = vmatprep.subr.mxu0 0.0
  %74 = vmatpush1.msra.mxu0 0.0
  %75 = vmatprep.subr.mxu0 0.0
  %76 = vmatpush1.msra.mxu0 0.0
  %77 = vmatprep.subr.mxu0 0.0
  %78 = vmatpush1.msra.mxu0 0.0
  %79 = vmatprep.subr.mxu0 0.0
  %80 = vmatpush1.msra.mxu0 0.0
  %81 = vmatprep.subr.mxu0 0.0
  %82 = vmatpush1.msra.mxu0 0.0
  %83 = vmatprep.subr.mxu0 0.0
  %84 = vmatpush1.msra.mxu0 0.0
  %85 = vmatprep.subr.mxu0 0.0
  %86 = vmatpush1.msra.mxu0 0.0
  %87 = vmatprep.subr.mxu0 0.0
  %88 = vmatpush1.msra.mxu0 0.0
  %89 = vmatprep.subr.mxu0 0.0
  %90 = vmatpush1.msra.mxu0 0.0
  %91 = vmatprep.subr.mxu0 0.0
  %92 = vmatpush1.msra.mxu0 0.0
  %93 = vmatprep.subr.mxu0 0.0
  %94 = vmatpush1.msra.mxu0 0.0
  %95 = vmatprep.subr.mxu0 0.0
  %96 = vmatpush1.msra.mxu0 0.0
  %97 = vmatprep.subr.mxu0 0.0
  %98 = vmatpush1.msra.mxu0 0.0
  %99 = vmatprep.subr.mxu0 0.0
  %100 = vmatpush1.msra.mxu0 0.0
  %101 = vmatprep.subr.mxu0 0.0
  %102 = vmatpush1.msra.mxu0 0.0
  %103 = vmatprep.subr.mxu0 0.0
  %104 = vmatpush1.msra.mxu0 0.0
  %105 = vmatprep.subr.mxu0 0.0
  %106 = vmatpush1.msra.mxu0 0.0
  %107 = vmatprep.mubr.f32.mxu0 0.0
  %108 = vmatmul.mubr.f32.gmra.mrb[0].mxu0 %v37
  %v109 = vpop.f32.mrb[0].mxu0
  %v110 = vadd.f32 %v33, %v109
  %v111 = vpop.f32.mrb[0].mxu0
  %112 = vdwg.mxu0
  %vm113 = vcmask 1042432
  %v114 = vsel %vm113, %v110, 0.0
  %v115 = vrot.slane %v114, 4
  %v116 = vadd.f32 %v114, %v115
  %v117 = vrot.slane %v116, 2
  %v118 = vadd.f32 %v116, %v117
  %v119 = vrot.slane %v118, 1
  %v120 = vadd.f32 %v118, %v119
  %v121 = vrcp.pop 3.0
  %v122 = vmul.f32 %v120, %v121
  %v123 = vsub.f32 %v110, %v122
  %v124 = vmul.f32 %v123, %v123
  %v125 = vsel %vm113, %v124, 0.0
  %v126 = vrot.slane %v125, 4
  %v127 = vadd.f32 %v125, %v126
  %v128 = vrot.slane %v127, 2
  %v129 = vadd.f32 %v127, %v128
  %v130 = vrot.slane %v129, 1
  %v131 = vadd.f32 %v129, %v130
  %v132 = vmul.f32 %v131, %v121
  %v133 = vadd.f32 %v132, 1e-05
  %v134 = vrsqrt.pop %v133
  %v135 = vmul.f32 %v123, %v134
  %v136 = vld [vmem:[%s3] sm:$0x7]
  %138 = vset.pattern.permute.xlu0 0
  %139 = vperm.xlu0 %138, %v136
  %v140 = vpop.permute.xlu0 %139
  %v142 = vsub.f32 %v135, %v140
  %v143 = vmul.f32 %v142, %v142
  %v144 = vsub.f32 0.0, %v143
  %v145 = vld [vmem:[%s5] sm:$0x7]
  %147 = vset.pattern.permute.xlu0 0
  %148 = vperm.xlu0 %147, %v145
  %v149 = vpop.permute.xlu0 %148
  %v151 = vmul.f32 %v144, %v149
  %v152 = vmul.f32 %v151, 1.442695
  %v153 = vpow.pop %v152
  %v154 = vld [vmem:[%s4] sm:$0x7]
  %156 = vset.pattern.permute.xlu0 0
  %157 = vperm.xlu0 %156, %v154
  %v158 = vpop.permute.xlu0 %157
  %v160 = vsub.f32 %v135, %v158
  %v161 = vmul.f32 %v160, %v160
  %v162 = vsub.f32 0.0, %v161
  %v163 = vld [vmem:[%s6] sm:$0x7]
  %165 = vset.pattern.permute.xlu0 0
  %166 = vperm.xlu0 %165, %v163
  %v167 = vpop.permute.xlu0 %166
  %v169 = vmul.f32 %v162, %v167
  %v170 = vmul.f32 %v169, 1.442695
  %v171 = vpow.pop %v170
  %v172 = vadd.f32 %v153, 1e-16
  %v173 = vmin.f32 %v172, 0.99998
  %v174 = vadd.f32 %v171, 1e-16
  %v175 = vmin.f32 %v174, 0.99998
  %v176 = vsub.f32 1.0, %v173
  %v177 = vsub.f32 1.0, %v175
  %v178 = vlaneseq
  %v179 = vshrl.u32 %v178, 7
  %v180 = vshra.s32 %v179, 2
  %v181 = vand.u32 %v180, 1
  %vm182 = vcmp.eq.s32.totalorder %v181, 1
  %v183 = vlaneseq
  %v184 = vshrl.u32 %v183, 7
  %v185 = vsub.s32 0, %v184
  %v186 = vrot.slane %v175, %v185
  %v187 = vlaneseq
  %v188 = vshrl.u32 %v187, 7
  %v189 = vsub.s32 0, %v188
  %v190 = vrot.slane %v173, %v189
  %v191 = vsel %vm182, %v186, %v190
  %v192 = vshra.s32 %v179, 1
  %v193 = vand.u32 %v192, 1
  %vm194 = vcmp.eq.s32.totalorder %v193, 1
  %v195 = vlaneseq
  %v196 = vshrl.u32 %v195, 7
  %v197 = vsub.s32 1, %v196
  %v198 = vrot.slane %v177, %v197
  %v199 = vlaneseq
  %v200 = vshrl.u32 %v199, 7
  %v201 = vsub.s32 1, %v200
  %v202 = vrot.slane %v176, %v201
  %v203 = vsel %vm194, %v198, %v202
  %v204 = vand.u32 %v179, 1
  %vm205 = vcmp.eq.s32.totalorder %v204, 1
  %v206 = vlaneseq
  %v207 = vshrl.u32 %v206, 7
  %v208 = vsub.s32 2, %v207
  %v209 = vrot.slane %v177, %v208
  %v210 = vlaneseq
  %v211 = vshrl.u32 %v210, 7
  %v212 = vsub.s32 2, %v211
  %v213 = vrot.slane %v176, %v212
  %v214 = vsel %vm205, %v209, %v213
  %v215 = vmul.f32 %v191, %v203
  %v216 = vmul.f32 %v215, %v214
  %217 = vst [vmem:[%s7] sm:$0xff] %v216
  // Predicated region
  $region30: #{qfnn_forward.2} parent=0 // pred_check
    _
  $region31: #{qfnn_forward.2} parent=0 // pred_check_branch
    %219 = sbr.rel (0) target = $region33
  $region32: #{qfnn_forward.2} parent=0 // pred_region
    _
  $region33: #{qfnn_forward.2} parent=0 // pred_fallthru
    _
  // Predicated region
  $region34: #{qfnn_forward.2} parent=0 // pred_check
    _
  $region35: #{qfnn_forward.2} parent=0 // pred_check_branch
    %221 = sbr.rel (0) target = $region37
  $region36: #{qfnn_forward.2} parent=0 // pred_region
    _
  $region37: #{qfnn_forward.2} parent=0 // pred_fallthru
    _

</llo_original>
